<compile_context>
chip_gen: v5e
topology: v5e:2x2
jax: 0.10.0
libtpu: 0.0.40
codegen_flags: <defaults>
</compile_context>

<pallas_src>
import functools

import jax
import jax.numpy as jnp
from jax.experimental import pallas as pl
from jax.experimental.pallas import tpu as pltpu

NUM_HEADS = 5  # cls, det, ref1, ref2, ref3


def _round_up(v, m):
    return (v + m - 1) // m * m


def _heads_kernel(x_ref, w_ref, b_ref, out_ref, *, k, training):
    """Fused pool+linear for all 5 heads; class softmax for cls/ref heads in eval."""
    logits = jnp.dot(x_ref[...], w_ref[...],
                     preferred_element_type=jnp.float32) + b_ref[...]
    out_ref[...] = logits                      # one lane-dense store of the full slab
    if training:
        return
    # eval: softmax over classes for cls / ref1 / ref2 / ref3. det (head 1) stays
    # raw here; its per-image softmax over proposals runs in the second kernel.
    for h in (0, 2, 3, 4):
        head = logits[:, h * k:(h + 1) * k]    # static K-wide slice (real classes only)
        m = jnp.max(head, axis=1, keepdims=True)
        e = jnp.exp(head - m)
        s = jnp.sum(e, axis=1, keepdims=True)
        out_ref[:, pl.ds(h * k, k)] = e * pl.reciprocal(s, approx=True)


def _det_softmax_kernel(z_ref, out_ref, *, k, offsets, counts):
    """Per-image softmax over proposals (dim 0) on the det columns, in place."""
    out_ref[...] = z_ref[...]                  # pass cls/ref/padding through unchanged
    for off, n in zip(offsets, counts):        # proposal counts are static Python ints
        blk = z_ref[pl.ds(off, n), pl.ds(k, k)]          # (n, K) det logits of image
        m = jnp.max(blk, axis=0, keepdims=True)
        e = jnp.exp(blk - m)                              # no masked exp -> no NaN
        s = jnp.sum(e, axis=0, keepdims=True)
        out_ref[pl.ds(off, n), pl.ds(k, k)] = e * pl.reciprocal(s, approx=True)


@functools.partial(jax.jit, static_argnames=("counts", "training", "use_bf16"))
def _oicr_forward(x, wc, bc, wd, bd, w1, b1, w2, b2, w3, b3, *,
                  counts, training, use_bf16):
    N, C, H, W = x.shape
    K = wc.shape[0]
    HW = H * W
    D = C * HW

    # ---- fold the AdaptiveAvgPool2d(1) into the matmul ----------------------
    x_flat = x.reshape(N, D)

    def expand(w):                    # torch layout (K, C) -> (C*H*W, K), absorbs 1/HW
        return jnp.repeat(w.T / HW, HW, axis=0)

    w_fused = jnp.concatenate(
        [expand(wc), expand(wd), expand(w1), expand(w2), expand(w3)], axis=1)
    b_fused = jnp.concatenate([bc, bd, b1, b2, b3]).reshape(1, NUM_HEADS * K)

    # ---- pad to lane/sublane-friendly shapes ---------------------------------
    Dp = _round_up(D, 128)                       # contraction dim -> 128 multiple
    Kp = _round_up(NUM_HEADS * K, 128)           # fused output -> lane dense
    TN = min(128, _round_up(N, 16))              # N-tile (16 ok for bf16 packing)
    Np = _round_up(N, TN)

    x_p = jnp.pad(x_flat, ((0, Np - N), (0, Dp - D)))
    w_p = jnp.pad(w_fused, ((0, Dp - D), (0, Kp - NUM_HEADS * K)))
    b_p = jnp.pad(b_fused, ((0, 0), (0, Kp - NUM_HEADS * K)))

    if use_bf16:                                 # v6e/v7x MXU fast path, f32 accumulate
        x_p = x_p.astype(jnp.bfloat16)
        w_p = w_p.astype(jnp.bfloat16)

    fused = pl.pallas_call(
        functools.partial(_heads_kernel, k=K, training=training),
        out_shape=jax.ShapeDtypeStruct((Np, Kp), jnp.float32),
        grid=(Np // TN,),
        in_specs=[
            pl.BlockSpec((TN, Dp), lambda i: (i, 0)),    # x tile (pipelined over N)
            pl.BlockSpec((Dp, Kp), lambda i: (0, 0)),    # fused weights (resident)
            pl.BlockSpec((1, Kp), lambda i: (0, 0)),     # fused bias
        ],
        out_specs=pl.BlockSpec((TN, Kp), lambda i: (i, 0)),
        compiler_params=pltpu.CompilerParams(
            dimension_semantics=("parallel",)),          # shard N-tiles across TCs
    )(x_p, w_p, b_p)

    if not training:
        offsets, off = [], 0
        for n in counts:
            offsets.append(off)
            off += n
        fused = pl.pallas_call(
            functools.partial(_det_softmax_kernel, k=K,
                              offsets=tuple(offsets), counts=tuple(counts)),
            out_shape=jax.ShapeDtypeStruct((Np, Kp), jnp.float32),
            grid=(1,),
            in_specs=[pl.BlockSpec((Np, Kp), lambda i: (0, 0))],
            out_specs=pl.BlockSpec((Np, Kp), lambda i: (0, 0)),
            input_output_aliases={0: 0},                 # update the slab in place
        )(fused)

    cls = fused[:N, 0 * K:1 * K]
    det = fused[:N, 1 * K:2 * K]
    r1 = fused[:N, 2 * K:3 * K]
    r2 = fused[:N, 3 * K:4 * K]
    r3 = fused[:N, 4 * K:5 * K]
    return cls, det, r1, r2, r3


def oicr_predictor(x, params, proposal_counts, training=False, use_bf16=False):
    """x: (N, C, H, W) ROI features; params: torch-layout (K,C) weights, (K,) biases."""
    counts = tuple(int(n) for n in proposal_counts)
    assert sum(counts) == x.shape[0]
    cls, det, r1, r2, r3 = _oicr_forward(
        x, *params, counts=counts, training=bool(training), use_bf16=bool(use_bf16))
    return cls, det, [r1, r2, r3]


# ----------------------------- pure-JAX reference -----------------------------
def _reference(x, params, proposal_counts, training):
    wc, bc, wd, bd, w1, b1, w2, b2, w3, b3 = params
    pooled = x.mean(axis=(2, 3))
    lin = lambda w, b: pooled @ w.T + b
    cls, det = lin(wc, bc), lin(wd, bd)
    r1, r2, r3 = lin(w1, b1), lin(w2, b2), lin(w3, b3)
    if not training:
        cls = jax.nn.softmax(cls, axis=1)
        parts, off = [], 0
        for n in proposal_counts:
            parts.append(jax.nn.softmax(det[off:off + n], axis=0))
            off += n
        det = jnp.concatenate(parts, axis=0)
        r1 = jax.nn.softmax(r1, axis=1)
        r2 = jax.nn.softmax(r2, axis=1)
        r3 = jax.nn.softmax(r3, axis=1)
    return cls, det, [r1, r2, r3]


if __name__ == "__main__":
    # Small synthetic config: 10 proposals split [6, 4] across 2 images,
    # in_channels=32, ROI feature map 4x4, num_classes=8.
    N, C, H, W, K = 10, 32, 4, 4, 8
    proposal_counts = (6, 4)

    key = jax.random.PRNGKey(0)
    ks = jax.random.split(key, 6)
    x = jax.random.normal(ks[0], (N, C, H, W), dtype=jnp.float32)

    # nn.init.normal_(weight, std=0.001); bias = 0.  (PyTorch Linear weight: (K, C))
    params = []
    for i in range(NUM_HEADS):
        w = 0.001 * jax.random.normal(ks[i + 1], (K, C), dtype=jnp.float32)
        b = jnp.zeros((K,), dtype=jnp.float32)
        params.extend([w, b])
    params = tuple(params)

    # Eval path (class softmaxes + per-image proposal softmax).
    cls_e, det_e, refs_e = oicr_predictor(x, params, proposal_counts, training=False)
    # Training path (raw logits).
    cls_t, det_t, refs_t = oicr_predictor(x, params, proposal_counts, training=True)
    # bf16 fast path (v6e/v7x), f32 accumulation.
    cls_b, det_b, refs_b = oicr_predictor(x, params, proposal_counts,
                                          training=False, use_bf16=True)
    jax.block_until_ready((cls_e, det_e, refs_e, cls_t, det_t, refs_t,
                           cls_b, det_b, refs_b))

    rcls_e, rdet_e, rrefs_e = _reference(x, params, proposal_counts, training=False)
    rcls_t, rdet_t, rrefs_t = _reference(x, params, proposal_counts, training=True)

    def ok(a, b, tol):
        return bool(jnp.allclose(a, b, atol=tol, rtol=tol))

    assert ok(cls_e, rcls_e, 1e-3) and ok(det_e, rdet_e, 1e-3)
    for a, b in zip(refs_e, rrefs_e):
        assert ok(a, b, 1e-3)
    assert ok(cls_t, rcls_t, 1e-3) and ok(det_t, rdet_t, 1e-3)
    for a, b in zip(refs_t, rrefs_t):
        assert ok(a, b, 1e-3)
    assert ok(cls_b, rcls_e, 1e-2) and ok(det_b, rdet_e, 1e-2)
    for a, b in zip(refs_b, rrefs_e):
        assert ok(a, b, 1e-2)

    print("KERNEL_OK")
</pallas_src>

<mosaic_0001>
module attributes {stable_mosaic.version = 11 : i64} {
  func.func @_heads_kernel(%arg0: i32, %arg1: memref<16x512xf32, #tpu.memory_space<vmem>>, %arg2: memref<512x128xf32, #tpu.memory_space<vmem>>, %arg3: memref<1x128xf32, #tpu.memory_space<vmem>>, %arg4: memref<16x128xf32, #tpu.memory_space<vmem>>) attributes {dimension_semantics = [#tpu.dimension_semantics<parallel>], iteration_bounds = array<i64: 1>, scalar_prefetch = 0 : i64, scratch_operands = 0 : i64, tpu.core_type = #tpu.core_type<tc>, window_params = [{transform_indices = @transform_0, window_bounds = array<i64: 16, 512>}, {pipeline_mode = #tpu.pipeline_mode<synchronous>, transform_indices = @transform_1, window_bounds = array<i64: 512, 128>}, {pipeline_mode = #tpu.pipeline_mode<synchronous>, transform_indices = @transform_2, window_bounds = array<i64: 1, 128>}, {transform_indices = @transform_3, window_bounds = array<i64: 16, 128>}]} {
    %c0 = arith.constant 0 : index
    %c0_0 = arith.constant 0 : index
    %0 = vector.load %arg1[%c0, %c0_0] : memref<16x512xf32, #tpu.memory_space<vmem>>, vector<16x512xf32>
    %c0_1 = arith.constant 0 : index
    %c0_2 = arith.constant 0 : index
    %1 = vector.load %arg2[%c0_1, %c0_2] : memref<512x128xf32, #tpu.memory_space<vmem>>, vector<512x128xf32>
    %cst = arith.constant dense<0.000000e+00> : vector<16x128xf32>
    %2 = tpu.matmul %0, %1, %cst {dimension_numbers = #tpu.dot_dimension_numbers<[1], [0], [0], [1], [0, 0, 1, 1], [], []>} : vector<16x512xf32>, vector<512x128xf32>, vector<16x128xf32> -> vector<16x128xf32>
    %c0_3 = arith.constant 0 : index
    %c0_4 = arith.constant 0 : index
    %3 = vector.load %arg3[%c0_3, %c0_4] : memref<1x128xf32, #tpu.memory_space<vmem>>, vector<1x128xf32>
    %4 = vector.broadcast %3 : vector<1x128xf32> to vector<16x128xf32>
    %5 = arith.addf %2, %4 : vector<16x128xf32>
    %c0_5 = arith.constant 0 : index
    %c0_6 = arith.constant 0 : index
    %6 = vector.load %arg4[%c0_5, %c0_6] : memref<16x128xf32, #tpu.memory_space<vmem>>, vector<16x128xf32>
    tpu.vector_store %arg4[%c0_5, %c0_6], %5 {strides = array<i32>} : memref<16x128xf32, #tpu.memory_space<vmem>>, vector<16x128xf32>,
    %7 = vector.extract_strided_slice %5 {offsets = [0, 0], sizes = [16, 8], strides = [1, 1]} : vector<16x128xf32> to vector<16x8xf32>
    %cst_7 = arith.constant dense<0xFF800000> : vector<16xf32>
    %8 = vector.multi_reduction <maximumf>, %7, %cst_7 [1] : vector<16x8xf32> to vector<16xf32>
    %9 = vector.shape_cast %8 : vector<16xf32> to vector<16x1xf32>
    %10 = vector.broadcast %9 : vector<16x1xf32> to vector<16x8xf32>
    %11 = arith.subf %7, %10 : vector<16x8xf32>
    %12 = math.exp %11 : vector<16x8xf32>
    %cst_8 = arith.constant dense<0.000000e+00> : vector<16xf32>
    %13 = vector.multi_reduction <add>, %12, %cst_8 [1] : vector<16x8xf32> to vector<16xf32>
    %14 = vector.shape_cast %13 : vector<16xf32> to vector<16x1xf32>
    %15 = tpu.reciprocal %14 {approx = true} : vector<16x1xf32> -> vector<16x1xf32>
    %16 = vector.broadcast %15 : vector<16x1xf32> to vector<16x8xf32>
    %17 = arith.mulf %12, %16 : vector<16x8xf32>
    %c0_9 = arith.constant 0 : index
    %c0_10 = arith.constant 0 : index
    %18 = vector.load %arg4[%c0_9, %c0_10] : memref<16x128xf32, #tpu.memory_space<vmem>>, vector<16x8xf32>
    tpu.vector_store %arg4[%c0_9, %c0_10], %17 {strides = array<i32>} : memref<16x128xf32, #tpu.memory_space<vmem>>, vector<16x8xf32>,
    %19 = vector.extract_strided_slice %5 {offsets = [0, 16], sizes = [16, 8], strides = [1, 1]} : vector<16x128xf32> to vector<16x8xf32>
    %cst_11 = arith.constant dense<0xFF800000> : vector<16xf32>
    %20 = vector.multi_reduction <maximumf>, %19, %cst_11 [1] : vector<16x8xf32> to vector<16xf32>
    %21 = vector.shape_cast %20 : vector<16xf32> to vector<16x1xf32>
    %22 = vector.broadcast %21 : vector<16x1xf32> to vector<16x8xf32>
    %23 = arith.subf %19, %22 : vector<16x8xf32>
    %24 = math.exp %23 : vector<16x8xf32>
    %cst_12 = arith.constant dense<0.000000e+00> : vector<16xf32>
    %25 = vector.multi_reduction <add>, %24, %cst_12 [1] : vector<16x8xf32> to vector<16xf32>
    %26 = vector.shape_cast %25 : vector<16xf32> to vector<16x1xf32>
    %27 = tpu.reciprocal %26 {approx = true} : vector<16x1xf32> -> vector<16x1xf32>
    %28 = vector.broadcast %27 : vector<16x1xf32> to vector<16x8xf32>
    %29 = arith.mulf %24, %28 : vector<16x8xf32>
    %c0_13 = arith.constant 0 : index
    %c16 = arith.constant 16 : index
    %30 = vector.load %arg4[%c0_13, %c16] : memref<16x128xf32, #tpu.memory_space<vmem>>, vector<16x8xf32>
    tpu.vector_store %arg4[%c0_13, %c16], %29 {strides = array<i32>} : memref<16x128xf32, #tpu.memory_space<vmem>>, vector<16x8xf32>,
    %31 = vector.extract_strided_slice %5 {offsets = [0, 24], sizes = [16, 8], strides = [1, 1]} : vector<16x128xf32> to vector<16x8xf32>
    %cst_14 = arith.constant dense<0xFF800000> : vector<16xf32>
    %32 = vector.multi_reduction <maximumf>, %31, %cst_14 [1] : vector<16x8xf32> to vector<16xf32>
    %33 = vector.shape_cast %32 : vector<16xf32> to vector<16x1xf32>
    %34 = vector.broadcast %33 : vector<16x1xf32> to vector<16x8xf32>
    %35 = arith.subf %31, %34 : vector<16x8xf32>
    %36 = math.exp %35 : vector<16x8xf32>
    %cst_15 = arith.constant dense<0.000000e+00> : vector<16xf32>
    %37 = vector.multi_reduction <add>, %36, %cst_15 [1] : vector<16x8xf32> to vector<16xf32>
    %38 = vector.shape_cast %37 : vector<16xf32> to vector<16x1xf32>
    %39 = tpu.reciprocal %38 {approx = true} : vector<16x1xf32> -> vector<16x1xf32>
    %40 = vector.broadcast %39 : vector<16x1xf32> to vector<16x8xf32>
    %41 = arith.mulf %36, %40 : vector<16x8xf32>
    %c0_16 = arith.constant 0 : index
    %c24 = arith.constant 24 : index
    %42 = vector.load %arg4[%c0_16, %c24] : memref<16x128xf32, #tpu.memory_space<vmem>>, vector<16x8xf32>
    tpu.vector_store %arg4[%c0_16, %c24], %41 {strides = array<i32>} : memref<16x128xf32, #tpu.memory_space<vmem>>, vector<16x8xf32>,
    %43 = vector.extract_strided_slice %5 {offsets = [0, 32], sizes = [16, 8], strides = [1, 1]} : vector<16x128xf32> to vector<16x8xf32>
    %cst_17 = arith.constant dense<0xFF800000> : vector<16xf32>
    %44 = vector.multi_reduction <maximumf>, %43, %cst_17 [1] : vector<16x8xf32> to vector<16xf32>
    %45 = vector.shape_cast %44 : vector<16xf32> to vector<16x1xf32>
    %46 = vector.broadcast %45 : vector<16x1xf32> to vector<16x8xf32>
    %47 = arith.subf %43, %46 : vector<16x8xf32>
    %48 = math.exp %47 : vector<16x8xf32>
    %cst_18 = arith.constant dense<0.000000e+00> : vector<16xf32>
    %49 = vector.multi_reduction <add>, %48, %cst_18 [1] : vector<16x8xf32> to vector<16xf32>
    %50 = vector.shape_cast %49 : vector<16xf32> to vector<16x1xf32>
    %51 = tpu.reciprocal %50 {approx = true} : vector<16x1xf32> -> vector<16x1xf32>
    %52 = vector.broadcast %51 : vector<16x1xf32> to vector<16x8xf32>
    %53 = arith.mulf %48, %52 : vector<16x8xf32>
    %c0_19 = arith.constant 0 : index
    %c32 = arith.constant 32 : index
    %54 = vector.load %arg4[%c0_19, %c32] : memref<16x128xf32, #tpu.memory_space<vmem>>, vector<16x8xf32>
    tpu.vector_store %arg4[%c0_19, %c32], %53 {strides = array<i32>} : memref<16x128xf32, #tpu.memory_space<vmem>>, vector<16x8xf32>,
    return
  }
  func.func @transform_0(%arg0: i32) -> (i32, i32) {
    %c0_i32 = arith.constant 0 : i32
    %c0_i32_0 = arith.constant 0 : i32
    return %arg0, %c0_i32 : i32, i32
  }
  func.func @transform_1(%arg0: i32) -> (i32, i32) {
    %c0_i32 = arith.constant 0 : i32
    %c0_i32_0 = arith.constant 0 : i32
    %c0_i32_1 = arith.constant 0 : i32
    return %c0_i32, %c0_i32_0 : i32, i32
  }
  func.func @transform_2(%arg0: i32) -> (i32, i32) {
    %c0_i32 = arith.constant 0 : i32
    %c0_i32_0 = arith.constant 0 : i32
    %c0_i32_1 = arith.constant 0 : i32
    return %c0_i32, %c0_i32_0 : i32, i32
  }
  func.func @transform_3(%arg0: i32) -> (i32, i32) {
    %c0_i32 = arith.constant 0 : i32
    %c0_i32_0 = arith.constant 0 : i32
    return %arg0, %c0_i32 : i32, i32
  }
}

module attributes {stable_mosaic.version = 11 : i64} {
  func.func @_det_softmax_kernel(%arg0: i32, %arg1: memref<16x128xf32, #tpu.memory_space<vmem>>, %arg2: memref<16x128xf32, #tpu.memory_space<vmem>>) attributes {dimension_semantics = [#tpu.dimension_semantics<arbitrary>], iteration_bounds = array<i64: 1>, scalar_prefetch = 0 : i64, scratch_operands = 0 : i64, tpu.core_type = #tpu.core_type<tc>, window_params = [{pipeline_mode = #tpu.pipeline_mode<synchronous>, transform_indices = @transform_0, window_bounds = array<i64: 16, 128>}, {pipeline_mode = #tpu.pipeline_mode<synchronous>, transform_indices = @transform_1, window_bounds = array<i64: 16, 128>}]} {
    %c0 = arith.constant 0 : index
    %c0_0 = arith.constant 0 : index
    %0 = vector.load %arg1[%c0, %c0_0] : memref<16x128xf32, #tpu.memory_space<vmem>>, vector<16x128xf32>
    %c0_1 = arith.constant 0 : index
    %c0_2 = arith.constant 0 : index
    %1 = vector.load %arg2[%c0_1, %c0_2] : memref<16x128xf32, #tpu.memory_space<vmem>>, vector<16x128xf32>
    tpu.vector_store %arg2[%c0_1, %c0_2], %0 {strides = array<i32>} : memref<16x128xf32, #tpu.memory_space<vmem>>, vector<16x128xf32>,
    %c0_3 = arith.constant 0 : index
    %c8 = arith.constant 8 : index
    %2 = vector.load %arg1[%c0_3, %c8] : memref<16x128xf32, #tpu.memory_space<vmem>>, vector<6x8xf32>
    %cst = arith.constant dense<0xFF800000> : vector<8xf32>
    %3 = vector.multi_reduction <maximumf>, %2, %cst [0] : vector<6x8xf32> to vector<8xf32>
    %4 = vector.shape_cast %3 : vector<8xf32> to vector<1x8xf32>
    %5 = vector.broadcast %4 : vector<1x8xf32> to vector<6x8xf32>
    %6 = arith.subf %2, %5 : vector<6x8xf32>
    %7 = math.exp %6 : vector<6x8xf32>
    %cst_4 = arith.constant dense<0.000000e+00> : vector<8xf32>
    %8 = vector.multi_reduction <add>, %7, %cst_4 [0] : vector<6x8xf32> to vector<8xf32>
    %9 = vector.shape_cast %8 : vector<8xf32> to vector<1x8xf32>
    %10 = tpu.reciprocal %9 {approx = true} : vector<1x8xf32> -> vector<1x8xf32>
    %11 = vector.broadcast %10 : vector<1x8xf32> to vector<6x8xf32>
    %12 = arith.mulf %7, %11 : vector<6x8xf32>
    %c0_5 = arith.constant 0 : index
    %c8_6 = arith.constant 8 : index
    %13 = vector.load %arg2[%c0_5, %c8_6] : memref<16x128xf32, #tpu.memory_space<vmem>>, vector<6x8xf32>
    tpu.vector_store %arg2[%c0_5, %c8_6], %12 {strides = array<i32>} : memref<16x128xf32, #tpu.memory_space<vmem>>, vector<6x8xf32>,
    %c6 = arith.constant 6 : index
    %c8_7 = arith.constant 8 : index
    %14 = vector.load %arg1[%c6, %c8_7] : memref<16x128xf32, #tpu.memory_space<vmem>>, vector<4x8xf32>
    %cst_8 = arith.constant dense<0xFF800000> : vector<8xf32>
    %15 = vector.multi_reduction <maximumf>, %14, %cst_8 [0] : vector<4x8xf32> to vector<8xf32>
    %16 = vector.shape_cast %15 : vector<8xf32> to vector<1x8xf32>
    %17 = vector.broadcast %16 : vector<1x8xf32> to vector<4x8xf32>
    %18 = arith.subf %14, %17 : vector<4x8xf32>
    %19 = math.exp %18 : vector<4x8xf32>
    %cst_9 = arith.constant dense<0.000000e+00> : vector<8xf32>
    %20 = vector.multi_reduction <add>, %19, %cst_9 [0] : vector<4x8xf32> to vector<8xf32>
    %21 = vector.shape_cast %20 : vector<8xf32> to vector<1x8xf32>
    %22 = tpu.reciprocal %21 {approx = true} : vector<1x8xf32> -> vector<1x8xf32>
    %23 = vector.broadcast %22 : vector<1x8xf32> to vector<4x8xf32>
    %24 = arith.mulf %19, %23 : vector<4x8xf32>
    %c6_10 = arith.constant 6 : index
    %c8_11 = arith.constant 8 : index
    %25 = vector.load %arg2[%c6_10, %c8_11] : memref<16x128xf32, #tpu.memory_space<vmem>>, vector<4x8xf32>
    tpu.vector_store %arg2[%c6_10, %c8_11], %24 {strides = array<i32>} : memref<16x128xf32, #tpu.memory_space<vmem>>, vector<4x8xf32>,
    return
  }
  func.func @transform_0(%arg0: i32) -> (i32, i32) {
    %c0_i32 = arith.constant 0 : i32
    %c0_i32_0 = arith.constant 0 : i32
    %c0_i32_1 = arith.constant 0 : i32
    return %c0_i32, %c0_i32_0 : i32, i32
  }
  func.func @transform_1(%arg0: i32) -> (i32, i32) {
    %c0_i32 = arith.constant 0 : i32
    %c0_i32_0 = arith.constant 0 : i32
    %c0_i32_1 = arith.constant 0 : i32
    return %c0_i32, %c0_i32_0 : i32, i32
  }
}

</mosaic_0001>

<llo_original>
// kernel: _oicr_forward.3
$region0: #{_oicr_forward.3}
  #allocation0 [shape = 'u32[]', space=smem, size = 0x4, offset = 0x4, fixed_abs, tag = 'smem constant byte address 0x4 - core index']
  #allocation1 [shape = 'u32[72,128]{1,0:T(1,128)}', space=vmem, size = 0x9000, scoped, tag = 'internal scratch']
  %s0 = inlined_call_operand.vmem [shape: f32[16,128], index: 0, kind: input, shape index: {}, may-alias: {0,1}]
  %s1 = inlined_call_operand.vmem [shape: f32[16,128], index: 1, kind: output, shape index: {}, may-alias: {0,1}]
  %s2 = sld [smem:[#allocation0]]
  $region14: #{_oicr_forward.3} parent=0
    _
  %s4 = ssub.s32 1, %s2
  %s5 = scalar_select 0, %s4, %s2
  // Predicated region
  $region2: #{_oicr_forward.3} parent=0 // pred_check
    _
  $region3: #{_oicr_forward.3} parent=0 // pred_check_branch
    %7 = sbr.rel (0) target = $region5
  $region4: #{_oicr_forward.3} parent=0 // pred_region
    _
  $region5: #{_oicr_forward.3} parent=0 // pred_fallthru
    _
  %v8 = vld [vmem:[%s0] sm:$0xff]
  %v9 = vld [vmem:[%s0 + $0x8] sm:$0xff]
  %10 = vst [vmem:[%s1] sm:$0xff] %v8
  %11 = vst [vmem:[%s1 + $0x8] sm:$0xff] %v9
  %v12 = vld [vmem:[%s0] sm:$0x3f]
  %vm13 = vcmask 128064
  %v14 = vsel %vm13, %v12, -inf
  %v15 = vrot.slane %v14, 4
  %v16 = vmax.f32 %v14, %v15
  %v17 = vrot.slane %v16, 2
  %v18 = vmax.f32 %v16, %v17
  %v19 = vrot.slane %v18, 1
  %v20 = vmax.f32 %v18, %v19
  %v21 = vsub.f32 %v12, %v20
  %v22 = vmul.f32 %v21, 1.442695
  %v23 = vpow.pop %v22
  %v24 = vsel %vm13, %v23, 0.0
  %v25 = vrot.slane %v24, 4
  %v26 = vadd.f32 %v24, %v25
  %v27 = vrot.slane %v26, 2
  %v28 = vadd.f32 %v26, %v27
  %v29 = vrot.slane %v28, 1
  %v30 = vadd.f32 %v28, %v29
  %v31 = vrcp.pop %v30
  %v32 = vmul.f32 %v23, %v31
  %33 = vst.msk [vmem:[%s1] sm:$0x3f] %vm13, %v32
  %v34 = vld [vmem:[%s0 + $0x6] sm:$0xf]
  %vm35 = vcmask 126016
  %v36 = vsel %vm35, %v34, -inf
  %v37 = vrot.slane %v36, 4
  %v38 = vmax.f32 %v36, %v37
  %v39 = vrot.slane %v38, 2
  %v40 = vmax.f32 %v38, %v39
  %v41 = vrot.slane %v40, 1
  %v42 = vmax.f32 %v40, %v41
  %v43 = vsub.f32 %v34, %v42
  %v44 = vmul.f32 %v43, 1.442695
  %v45 = vpow.pop %v44
  %v46 = vsel %vm35, %v45, 0.0
  %v47 = vrot.slane %v46, 4
  %v48 = vadd.f32 %v46, %v47
  %v49 = vrot.slane %v48, 2
  %v50 = vadd.f32 %v48, %v49
  %v51 = vrot.slane %v50, 1
  %v52 = vadd.f32 %v50, %v51
  %v53 = vrcp.pop %v52
  %v54 = vmul.f32 %v45, %v53
  %55 = vst.msk [vmem:[%s1 + $0x6] sm:$0xf] %vm35, %v54
  // Predicated region
  $region6: #{_oicr_forward.3} parent=0 // pred_check
    _
  $region7: #{_oicr_forward.3} parent=0 // pred_check_branch
    %57 = sbr.rel (0) target = $region9
  $region8: #{_oicr_forward.3} parent=0 // pred_region
    _
  $region9: #{_oicr_forward.3} parent=0 // pred_fallthru
    _
  // Predicated region
  $region10: #{_oicr_forward.3} parent=0 // pred_check
    _
  $region11: #{_oicr_forward.3} parent=0 // pred_check_branch
    %59 = sbr.rel (0) target = $region13
  $region12: #{_oicr_forward.3} parent=0 // pred_region
    _
  $region13: #{_oicr_forward.3} parent=0 // pred_fallthru
    _

// kernel: _oicr_forward.2
$region0: #{_oicr_forward.2}
  #allocation0 [shape = 'u32[]', space=smem, size = 0x4, offset = 0x4, fixed_abs, tag = 'smem constant byte address 0x4 - core index']
  #allocation1 [shape = 'u32[72,128]{1,0:T(1,128)}', space=vmem, size = 0x9000, scoped, tag = 'internal scratch']
  %s0 = inlined_call_operand.vmem [shape: f32[16,512], index: 0, kind: input, shape index: {}]
  %s1 = inlined_call_operand.vmem [shape: f32[512,128], index: 1, kind: input, shape index: {}]
  %s2 = inlined_call_operand.vmem [shape: f32[1,128], index: 2, kind: input, shape index: {}]
  %s3 = inlined_call_operand.vmem [shape: f32[16,128], index: 3, kind: output, shape index: {}]
  %s4 = sld [smem:[#allocation0]]
  $region22: #{_oicr_forward.2} parent=0
    _
  %s6 = ssub.s32 1, %s4
  %s7 = scalar_select 0, %s6, %s4
  // Predicated region
  $region2: #{_oicr_forward.2} parent=0 // pred_check
    _
  $region3: #{_oicr_forward.2} parent=0 // pred_check_branch
    %9 = sbr.rel (0) target = $region5
  $region4: #{_oicr_forward.2} parent=0 // pred_region
    _
  $region5: #{_oicr_forward.2} parent=0 // pred_fallthru
    _
  // Predicated region
  $region6: #{_oicr_forward.2} parent=0 // pred_check
    _
  $region7: #{_oicr_forward.2} parent=0 // pred_check_branch
    %11 = sbr.rel (0) target = $region9
  $region8: #{_oicr_forward.2} parent=0 // pred_region
    _
  $region9: #{_oicr_forward.2} parent=0 // pred_fallthru
    _
  // Predicated region
  $region10: #{_oicr_forward.2} parent=0 // pred_check
    _
  $region11: #{_oicr_forward.2} parent=0 // pred_check_branch
    %13 = sbr.rel (0) target = $region13
  $region12: #{_oicr_forward.2} parent=0 // pred_region
    _
  $region13: #{_oicr_forward.2} parent=0 // pred_fallthru
    _
  %v14 = vld [vmem:[%s0] sm:$0xff]
  %v15 = vld [vmem:[%s0 + $0x8] sm:$0xff]
  %v16 = vld [vmem:[%s0 + $0x10] sm:$0xff]
  %v17 = vld [vmem:[%s0 + $0x18] sm:$0xff]
  %v18 = vld [vmem:[%s0 + $0x20] sm:$0xff]
  %v19 = vld [vmem:[%s0 + $0x28] sm:$0xff]
  %v20 = vld [vmem:[%s0 + $0x30] sm:$0xff]
  %v21 = vld [vmem:[%s0 + $0x38] sm:$0xff]
  %v22 = vld [vmem:[%s1] sm:$0xff]
  %v23 = vld [vmem:[%s1 + $0x8] sm:$0xff]
  %v24 = vld [vmem:[%s1 + $0x10] sm:$0xff]
  %v25 = vld [vmem:[%s1 + $0x18] sm:$0xff]
  %v26 = vld [vmem:[%s1 + $0x20] sm:$0xff]
  %v27 = vld [vmem:[%s1 + $0x28] sm:$0xff]
  %v28 = vld [vmem:[%s1 + $0x30] sm:$0xff]
  %v29 = vld [vmem:[%s1 + $0x38] sm:$0xff]
  %v30 = vld [vmem:[%s1 + $0x40] sm:$0xff]
  %v31 = vld [vmem:[%s1 + $0x48] sm:$0xff]
  %v32 = vld [vmem:[%s1 + $0x50] sm:$0xff]
  %v33 = vld [vmem:[%s1 + $0x58] sm:$0xff]
  %v34 = vld [vmem:[%s1 + $0x60] sm:$0xff]
  %v35 = vld [vmem:[%s1 + $0x68] sm:$0xff]
  %v36 = vld [vmem:[%s1 + $0x70] sm:$0xff]
  %v37 = vld [vmem:[%s1 + $0x78] sm:$0xff]
  %v38 = vld [vmem:[%s1 + $0x80] sm:$0xff]
  %v39 = vld [vmem:[%s1 + $0x88] sm:$0xff]
  %v40 = vld [vmem:[%s1 + $0x90] sm:$0xff]
  %v41 = vld [vmem:[%s1 + $0x98] sm:$0xff]
  %v42 = vld [vmem:[%s1 + $0xa0] sm:$0xff]
  %v43 = vld [vmem:[%s1 + $0xa8] sm:$0xff]
  %v44 = vld [vmem:[%s1 + $0xb0] sm:$0xff]
  %v45 = vld [vmem:[%s1 + $0xb8] sm:$0xff]
  %v46 = vld [vmem:[%s1 + $0xc0] sm:$0xff]
  %v47 = vld [vmem:[%s1 + $0xc8] sm:$0xff]
  %v48 = vld [vmem:[%s1 + $0xd0] sm:$0xff]
  %v49 = vld [vmem:[%s1 + $0xd8] sm:$0xff]
  %v50 = vld [vmem:[%s1 + $0xe0] sm:$0xff]
  %v51 = vld [vmem:[%s1 + $0xe8] sm:$0xff]
  %v52 = vld [vmem:[%s1 + $0xf0] sm:$0xff]
  %v53 = vld [vmem:[%s1 + $0xf8] sm:$0xff]
  %v54 = vld [vmem:[%s1 + $0x100] sm:$0xff]
  %v55 = vld [vmem:[%s1 + $0x108] sm:$0xff]
  %v56 = vld [vmem:[%s1 + $0x110] sm:$0xff]
  %v57 = vld [vmem:[%s1 + $0x118] sm:$0xff]
  %v58 = vld [vmem:[%s1 + $0x120] sm:$0xff]
  %v59 = vld [vmem:[%s1 + $0x128] sm:$0xff]
  %v60 = vld [vmem:[%s1 + $0x130] sm:$0xff]
  %v61 = vld [vmem:[%s1 + $0x138] sm:$0xff]
  %v62 = vld [vmem:[%s1 + $0x140] sm:$0xff]
  %v63 = vld [vmem:[%s1 + $0x148] sm:$0xff]
  %v64 = vld [vmem:[%s1 + $0x150] sm:$0xff]
  %v65 = vld [vmem:[%s1 + $0x158] sm:$0xff]
  %v66 = vld [vmem:[%s1 + $0x160] sm:$0xff]
  %v67 = vld [vmem:[%s1 + $0x168] sm:$0xff]
  %v68 = vld [vmem:[%s1 + $0x170] sm:$0xff]
  %v69 = vld [vmem:[%s1 + $0x178] sm:$0xff]
  %v70 = vld [vmem:[%s1 + $0x180] sm:$0xff]
  %v71 = vld [vmem:[%s1 + $0x188] sm:$0xff]
  %v72 = vld [vmem:[%s1 + $0x190] sm:$0xff]
  %v73 = vld [vmem:[%s1 + $0x198] sm:$0xff]
  %v74 = vld [vmem:[%s1 + $0x1a0] sm:$0xff]
  %v75 = vld [vmem:[%s1 + $0x1a8] sm:$0xff]
  %v76 = vld [vmem:[%s1 + $0x1b0] sm:$0xff]
  %v77 = vld [vmem:[%s1 + $0x1b8] sm:$0xff]
  %v78 = vld [vmem:[%s1 + $0x1c0] sm:$0xff]
  %v79 = vld [vmem:[%s1 + $0x1c8] sm:$0xff]
  %v80 = vld [vmem:[%s1 + $0x1d0] sm:$0xff]
  %v81 = vld [vmem:[%s1 + $0x1d8] sm:$0xff]
  %v82 = vld [vmem:[%s1 + $0x1e0] sm:$0xff]
  %v83 = vld [vmem:[%s1 + $0x1e8] sm:$0xff]
  %v84 = vld [vmem:[%s1 + $0x1f0] sm:$0xff]
  %v85 = vld [vmem:[%s1 + $0x1f8] sm:$0xff]
  %v86 = vld [vmem:[%s2] sm:$0x1]
  %v88 = vperm.slane %v86, 0
  %90 = vmatpush.msra.mxu0 %v37
  %91 = vmatpush.msra.mxu0 %v36
  %92 = vmatpush.msra.mxu0 %v35
  %93 = vmatpush.msra.mxu0 %v34
  %94 = vmatpush.msra.mxu0 %v33
  %95 = vmatpush.msra.mxu0 %v32
  %96 = vmatpush.msra.mxu0 %v31
  %97 = vmatpush.msra.mxu0 %v30
  %98 = vmatpush.msra.mxu0 %v29
  %99 = vmatpush.msra.mxu0 %v28
  %100 = vmatpush.msra.mxu0 %v27
  %101 = vmatpush.msra.mxu0 %v26
  %102 = vmatpush.msra.mxu0 %v25
  %103 = vmatpush.msra.mxu0 %v24
  %104 = vmatpush.msra.mxu0 %v23
  %105 = vmatpush.msra.mxu0 %v22
  %106 = vmatmul.f32.gmra.mxu0 %v14
  %v107 = vpop.f32.mrf.mxu0
  %v108 = vadd.f32 %v88, %v107
  %109 = vmatmul.f32.gmra.mxu0 %v18
  %v110 = vpop.f32.mrf.mxu0
  %v111 = vadd.f32 %v88, %v110
  %112 = vdwg.mxu0
  %113 = vmatpush.msra.mxu0 %v53
  %114 = vmatpush.msra.mxu0 %v52
  %115 = vmatpush.msra.mxu0 %v51
  %116 = vmatpush.msra.mxu0 %v50
  %117 = vmatpush.msra.mxu0 %v49
  %118 = vmatpush.msra.mxu0 %v48
  %119 = vmatpush.msra.mxu0 %v47
  %120 = vmatpush.msra.mxu0 %v46
  %121 = vmatpush.msra.mxu0 %v45
  %122 = vmatpush.msra.mxu0 %v44
  %123 = vmatpush.msra.mxu0 %v43
  %124 = vmatpush.msra.mxu0 %v42
  %125 = vmatpush.msra.mxu0 %v41
  %126 = vmatpush.msra.mxu0 %v40
  %127 = vmatpush.msra.mxu0 %v39
  %128 = vmatpush.msra.mxu0 %v38
  %129 = vmatmul.f32.gmra.mxu0 %v15
  %v130 = vpop.f32.mrf.mxu0
  %v131 = vadd.f32 %v108, %v130
  %132 = vmatmul.f32.gmra.mxu0 %v19
  %v133 = vpop.f32.mrf.mxu0
  %v134 = vadd.f32 %v111, %v133
  %135 = vdwg.mxu0
  %136 = vmatpush.msra.mxu0 %v69
  %137 = vmatpush.msra.mxu0 %v68
  %138 = vmatpush.msra.mxu0 %v67
  %139 = vmatpush.msra.mxu0 %v66
  %140 = vmatpush.msra.mxu0 %v65
  %141 = vmatpush.msra.mxu0 %v64
  %142 = vmatpush.msra.mxu0 %v63
  %143 = vmatpush.msra.mxu0 %v62
  %144 = vmatpush.msra.mxu0 %v61
  %145 = vmatpush.msra.mxu0 %v60
  %146 = vmatpush.msra.mxu0 %v59
  %147 = vmatpush.msra.mxu0 %v58
  %148 = vmatpush.msra.mxu0 %v57
  %149 = vmatpush.msra.mxu0 %v56
  %150 = vmatpush.msra.mxu0 %v55
  %151 = vmatpush.msra.mxu0 %v54
  %152 = vmatmul.f32.gmra.mxu0 %v16
  %v153 = vpop.f32.mrf.mxu0
  %v154 = vadd.f32 %v131, %v153
  %155 = vmatmul.f32.gmra.mxu0 %v20
  %v156 = vpop.f32.mrf.mxu0
  %v157 = vadd.f32 %v134, %v156
  %158 = vdwg.mxu0
  %159 = vmatpush.msra.mxu0 %v85
  %160 = vmatpush.msra.mxu0 %v84
  %161 = vmatpush.msra.mxu0 %v83
  %162 = vmatpush.msra.mxu0 %v82
  %163 = vmatpush.msra.mxu0 %v81
  %164 = vmatpush.msra.mxu0 %v80
  %165 = vmatpush.msra.mxu0 %v79
  %166 = vmatpush.msra.mxu0 %v78
  %167 = vmatpush.msra.mxu0 %v77
  %168 = vmatpush.msra.mxu0 %v76
  %169 = vmatpush.msra.mxu0 %v75
  %170 = vmatpush.msra.mxu0 %v74
  %171 = vmatpush.msra.mxu0 %v73
  %172 = vmatpush.msra.mxu0 %v72
  %173 = vmatpush.msra.mxu0 %v71
  %174 = vmatpush.msra.mxu0 %v70
  %175 = vmatmul.f32.gmra.mxu0 %v17
  %v176 = vpop.f32.mrf.mxu0
  %v177 = vadd.f32 %v154, %v176
  %178 = vmatmul.f32.gmra.mxu0 %v21
  %v179 = vpop.f32.mrf.mxu0
  %v180 = vadd.f32 %v157, %v179
  %181 = vdwg.mxu0
  %182 = vst [vmem:[%s3] sm:$0xff] %v177
  %183 = vst [vmem:[%s3 + $0x8] sm:$0xff] %v180
  %vm184 = vcmask 64512
  %v185 = vsel %vm184, %v177, -inf
  %186 = vmax.xlane.f32.xlu0 %v185
  %v187 = vpop.xlane.xlu0 %186
  %v188 = vsel %vm184, %v180, -inf
  %189 = vmax.xlane.f32.xlu0 %v188
  %v190 = vpop.xlane.xlu0 %189
  %v191 = vsub.f32 %v177, %v187
  %v192 = vsub.f32 %v180, %v190
  %v193 = vmul.f32 %v191, 1.442695
  %v194 = vpow.pop %v193
  %v195 = vmul.f32 %v192, 1.442695
  %v196 = vpow.pop %v195
  %v197 = vsel %vm184, %v194, 0.0
  %198 = vadd.xlane.f32.xlu0 %v197
  %v199 = vpop.xlane.xlu0 %198
  %v200 = vsel %vm184, %v196, 0.0
  %201 = vadd.xlane.f32.xlu0 %v200
  %v202 = vpop.xlane.xlu0 %201
  %v203 = vrcp.pop %v199
  %v204 = vrcp.pop %v202
  %v205 = vmul.f32 %v194, %v203
  %v206 = vmul.f32 %v196, %v204
  %207 = vst.msk [vmem:[%s3] sm:$0xff] %vm184, %v205
  %208 = vst.msk [vmem:[%s3 + $0x8] sm:$0xff] %vm184, %v206
  %vm209 = vcmask 195712
  %v210 = vsel %vm209, %v177, -inf
  %211 = vmax.xlane.f32.xlu0 %v210
  %v212 = vpop.xlane.xlu0 %211
  %v213 = vsel %vm209, %v180, -inf
  %214 = vmax.xlane.f32.xlu0 %v213
  %v215 = vpop.xlane.xlu0 %214
  %v216 = vsub.f32 %v177, %v212
  %v217 = vsub.f32 %v180, %v215
  %v218 = vmul.f32 %v216, 1.442695
  %v219 = vpow.pop %v218
  %v220 = vmul.f32 %v217, 1.442695
  %v221 = vpow.pop %v220
  %224 = vrot.lane.b32.xlu0 %v219, 112
  %v225 = vpop.permute.xlu0 %224
  %226 = vrot.lane.b32.xlu0 %v221, 112
  %v227 = vpop.permute.xlu0 %226
  %v230 = vsel %vm184, %v225, 0.0
  %231 = vadd.xlane.f32.xlu0 %v230
  %v232 = vpop.xlane.xlu0 %231
  %v233 = vsel %vm184, %v227, 0.0
  %234 = vadd.xlane.f32.xlu0 %v233
  %v235 = vpop.xlane.xlu0 %234
  %v236 = vrcp.pop %v232
  %v237 = vrcp.pop %v235
  %v238 = vmul.f32 %v219, %v236
  %v239 = vmul.f32 %v221, %v237
  %240 = vst.msk [vmem:[%s3] sm:$0xff] %vm209, %v238
  %241 = vst.msk [vmem:[%s3 + $0x8] sm:$0xff] %vm209, %v239
  %vm242 = vcmask 261312
  %v243 = vsel %vm242, %v177, -inf
  %244 = vmax.xlane.f32.xlu0 %v243
  %v245 = vpop.xlane.xlu0 %244
  %v246 = vsel %vm242, %v180, -inf
  %247 = vmax.xlane.f32.xlu0 %v246
  %v248 = vpop.xlane.xlu0 %247
  %v249 = vsub.f32 %v177, %v245
  %v250 = vsub.f32 %v180, %v248
  %v251 = vmul.f32 %v249, 1.442695
  %v252 = vpow.pop %v251
  %v253 = vmul.f32 %v250, 1.442695
  %v254 = vpow.pop %v253
  %257 = vrot.lane.b32.xlu0 %v252, 104
  %v258 = vpop.permute.xlu0 %257
  %259 = vrot.lane.b32.xlu0 %v254, 104
  %v260 = vpop.permute.xlu0 %259
  %v263 = vsel %vm184, %v258, 0.0
  %264 = vadd.xlane.f32.xlu0 %v263
  %v265 = vpop.xlane.xlu0 %264
  %v266 = vsel %vm184, %v260, 0.0
  %267 = vadd.xlane.f32.xlu0 %v266
  %v268 = vpop.xlane.xlu0 %267
  %v269 = vrcp.pop %v265
  %v270 = vrcp.pop %v268
  %v271 = vmul.f32 %v252, %v269
  %v272 = vmul.f32 %v254, %v270
  %273 = vst.msk [vmem:[%s3] sm:$0xff] %vm242, %v271
  %274 = vst.msk [vmem:[%s3 + $0x8] sm:$0xff] %vm242, %v272
  %vm275 = vcmask 326912
  %v276 = vsel %vm275, %v177, -inf
  %277 = vmax.xlane.f32.xlu0 %v276
  %v278 = vpop.xlane.xlu0 %277
  %v279 = vsel %vm275, %v180, -inf
  %280 = vmax.xlane.f32.xlu0 %v279
  %v281 = vpop.xlane.xlu0 %280
  %v282 = vsub.f32 %v177, %v278
  %v283 = vsub.f32 %v180, %v281
  %v284 = vmul.f32 %v282, 1.442695
  %v285 = vpow.pop %v284
  %v286 = vmul.f32 %v283, 1.442695
  %v287 = vpow.pop %v286
  %290 = vrot.lane.b32.xlu0 %v285, 96
  %v291 = vpop.permute.xlu0 %290
  %292 = vrot.lane.b32.xlu0 %v287, 96
  %v293 = vpop.permute.xlu0 %292
  %v296 = vsel %vm184, %v291, 0.0
  %297 = vadd.xlane.f32.xlu0 %v296
  %v298 = vpop.xlane.xlu0 %297
  %v299 = vsel %vm184, %v293, 0.0
  %300 = vadd.xlane.f32.xlu0 %v299
  %v301 = vpop.xlane.xlu0 %300
  %v302 = vrcp.pop %v298
  %v303 = vrcp.pop %v301
  %v304 = vmul.f32 %v285, %v302
  %v305 = vmul.f32 %v287, %v303
  %306 = vst.msk [vmem:[%s3] sm:$0xff] %vm275, %v304
  %307 = vst.msk [vmem:[%s3 + $0x8] sm:$0xff] %vm275, %v305
  // Predicated region
  $region14: #{_oicr_forward.2} parent=0 // pred_check
    _
  $region15: #{_oicr_forward.2} parent=0 // pred_check_branch
    %309 = sbr.rel (0) target = $region17
  $region16: #{_oicr_forward.2} parent=0 // pred_region
    _
  $region17: #{_oicr_forward.2} parent=0 // pred_fallthru
    _
  // Predicated region
  $region18: #{_oicr_forward.2} parent=0 // pred_check
    _
  $region19: #{_oicr_forward.2} parent=0 // pred_check_branch
    %311 = sbr.rel (0) target = $region21
  $region20: #{_oicr_forward.2} parent=0 // pred_region
    _
  $region21: #{_oicr_forward.2} parent=0 // pred_fallthru
    _

</llo_original>
